<compile_context>
chip_gen: v7x
topology: tpu7x:2x2x1
jax: 0.10.0
libtpu: 0.0.40
codegen_flags: <defaults>
</compile_context>

<pallas_src>
import jax
import jax.numpy as jnp
from jax.experimental import pallas as pl
from jax.experimental.pallas import tpu as pltpu


def _round_up(x, m):
    return ((x + m - 1) // m) * m


def _pad_to(a, shape):
    return jnp.pad(a, [(0, s - d) for d, s in zip(a.shape, shape)])


def _pad_gate_cols(w, H, P):
    """[..., 4H] -> [..., 4P], keeping the torch (i, f, g, o) gate blocks
    aligned to 128-lane boundaries (block k lands at columns [k*P, k*P+H))."""
    blocks = []
    for k in range(4):
        blk = w[..., k * H:(k + 1) * H]
        blocks.append(jnp.pad(blk, [(0, 0)] * (w.ndim - 1) + [(0, P - H)]))
    return jnp.concatenate(blocks, axis=-1)


# ----------------------------------------------------------------------------
# Fused Pallas kernel: embedding -> n_layers x LSTM cell -> output projection
# ----------------------------------------------------------------------------
def _decoder_step_kernel(x_ref, h_ref, c_ref,
                         w_emb_ref, b_emb_ref,
                         w_lstm_ref, b_lstm_ref,
                         w_out_ref, b_out_ref,
                         pred_ref, h_out_ref, c_out_ref,
                         z_ref):
    n_layers, _, P = h_ref.shape

    # embedding Linear; nn.Dropout is identity in eval mode.
    # TODO(synk): training-mode dropout (random mask) is not implemented.
    x = (jnp.dot(x_ref[...], w_emb_ref[...], preferred_element_type=jnp.float32)
         + b_emb_ref[...])

    for l in range(n_layers):                       # static unroll over layers
        h_prev = h_ref[l]
        c_prev = c_ref[l]
        # pack [x, h] so the gate pre-activation is ONE MXU matmul (K = 2P)
        z_ref[:, :P] = x
        z_ref[:, P:] = h_prev
        gates = (jnp.dot(z_ref[...], w_lstm_ref[l],
                         preferred_element_type=jnp.float32)
                 + b_lstm_ref[l])
        # torch nn.LSTM gate order: i, f, g, o — each block is 128-lane aligned
        i = jax.nn.sigmoid(gates[:, 0 * P:1 * P])
        f = jax.nn.sigmoid(gates[:, 1 * P:2 * P])
        g = jnp.tanh(gates[:, 2 * P:3 * P])
        o = jax.nn.sigmoid(gates[:, 3 * P:4 * P])
        c_new = f * c_prev + i * g
        h_new = o * jnp.tanh(c_new)
        h_out_ref[l] = h_new
        c_out_ref[l] = c_new
        x = h_new                                   # input to the next layer

    pred_ref[...] = (jnp.dot(x, w_out_ref[...],
                             preferred_element_type=jnp.float32)
                     + b_out_ref[...])


# ----------------------------------------------------------------------------
# Wrapper: pad / pack params, call the fused kernel, unpad (mirrors torch API)
# ----------------------------------------------------------------------------
def decoder_forward(params, x, hidden, cell):
    """x: [B, output_dim]; hidden, cell: [n_layers, B, hidden_dim].

    Returns (predicted [B, 1, output_dim], hidden, cell) like Decoder.forward.
    """
    B, V = x.shape
    n_layers, _, H = hidden.shape
    E = params["w_emb"].shape[1]

    P = max(_round_up(E, 128), _round_up(H, 128))   # padded embed/hidden width
    Vp = _round_up(V, 128)                          # padded output width
    Bp = _round_up(B, 8)                            # padded batch (sublanes)

    # ---- pack / pad parameters (in production: pre-pack once, not per call) --
    w_emb = _pad_to(params["w_emb"], (Vp, P))
    b_emb = _pad_to(params["b_emb"][None, :], (1, P))
    w_out = _pad_to(params["w_out"], (P, Vp))
    b_out = _pad_to(params["b_out"][None, :], (1, Vp))

    w_layers, b_layers = [], []
    for (w_ih, w_hh, b) in params["lstm"]:
        w_ih_p = _pad_to(_pad_gate_cols(w_ih, H, P), (P, 4 * P))
        w_hh_p = _pad_to(_pad_gate_cols(w_hh, H, P), (P, 4 * P))
        w_layers.append(jnp.concatenate([w_ih_p, w_hh_p], axis=0))  # [2P, 4P]
        b_layers.append(_pad_gate_cols(b, H, P)[None, :])           # [1, 4P]
    w_lstm = jnp.stack(w_layers)                                    # [L, 2P, 4P]
    b_lstm = jnp.stack(b_layers)                                    # [L, 1, 4P]

    x_p = _pad_to(x, (Bp, Vp))
    h_p = _pad_to(hidden, (n_layers, Bp, P))
    c_p = _pad_to(cell, (n_layers, Bp, P))

    pred_p, h_out_p, c_out_p = pl.pallas_call(
        _decoder_step_kernel,
        out_shape=(
            jax.ShapeDtypeStruct((Bp, Vp), jnp.float32),
            jax.ShapeDtypeStruct((n_layers, Bp, P), jnp.float32),
            jax.ShapeDtypeStruct((n_layers, Bp, P), jnp.float32),
        ),
        scratch_shapes=[pltpu.VMEM((Bp, 2 * P), jnp.float32)],
    )(x_p, h_p, c_p, w_emb, b_emb, w_lstm, b_lstm, w_out, b_out)

    predicted = pred_p[:B, :V][:, None, :]          # [B, 1, output_dim]
    hidden_out = h_out_p[:, :B, :H]
    cell_out = c_out_p[:, :B, :H]
    return predicted, hidden_out, cell_out


# ----------------------------------------------------------------------------
# Pure-JAX reference (for correctness check) and parameter init
# ----------------------------------------------------------------------------
def decoder_forward_ref(params, x, hidden, cell):
    xs = x @ params["w_emb"] + params["b_emb"]
    h_list, c_list = [], []
    for l, (w_ih, w_hh, b) in enumerate(params["lstm"]):
        H = w_hh.shape[0]
        gates = xs @ w_ih + hidden[l] @ w_hh + b
        i = jax.nn.sigmoid(gates[:, 0 * H:1 * H])
        f = jax.nn.sigmoid(gates[:, 1 * H:2 * H])
        g = jnp.tanh(gates[:, 2 * H:3 * H])
        o = jax.nn.sigmoid(gates[:, 3 * H:4 * H])
        c_new = f * cell[l] + i * g
        h_new = o * jnp.tanh(c_new)
        h_list.append(h_new)
        c_list.append(c_new)
        xs = h_new
    pred = xs @ params["w_out"] + params["b_out"]
    return pred[:, None, :], jnp.stack(h_list), jnp.stack(c_list)


def init_params(key, embedding_dim, output_dim, hidden_dim, n_layers):
    ks = jax.random.split(key, 4 + 3 * n_layers)
    s = 0.1
    params = {
        "w_emb": s * jax.random.normal(ks[0], (output_dim, embedding_dim), jnp.float32),
        "b_emb": s * jax.random.normal(ks[1], (embedding_dim,), jnp.float32),
        "w_out": s * jax.random.normal(ks[2], (hidden_dim, output_dim), jnp.float32),
        "b_out": s * jax.random.normal(ks[3], (output_dim,), jnp.float32),
        "lstm": [],
    }
    for l in range(n_layers):
        in_dim = embedding_dim if l == 0 else hidden_dim
        kw, ku, kb = ks[4 + 3 * l], ks[5 + 3 * l], ks[6 + 3 * l]
        params["lstm"].append((
            s * jax.random.normal(kw, (in_dim, 4 * hidden_dim), jnp.float32),
            s * jax.random.normal(ku, (hidden_dim, 4 * hidden_dim), jnp.float32),
            s * jax.random.normal(kb, (4 * hidden_dim,), jnp.float32),  # b_ih+b_hh
        ))
    return params


if __name__ == "__main__":
    B = 2
    EMBEDDING_DIM, OUTPUT_DIM, HIDDEN_DIM, N_LAYERS = 32, 32, 32, 2

    key = jax.random.PRNGKey(0)
    kx, kh, kc, kp = jax.random.split(key, 4)
    x = jax.random.normal(kx, (B, OUTPUT_DIM), jnp.float32)
    hidden = jax.random.normal(kh, (N_LAYERS, B, HIDDEN_DIM), jnp.float32)
    cell = jax.random.normal(kc, (N_LAYERS, B, HIDDEN_DIM), jnp.float32)
    params = init_params(kp, EMBEDDING_DIM, OUTPUT_DIM, HIDDEN_DIM, N_LAYERS)

    pred, h1, c1 = decoder_forward(params, x, hidden, cell)
    pred, h1, c1 = jax.block_until_ready((pred, h1, c1))

    assert pred.shape == (B, 1, OUTPUT_DIM)
    assert h1.shape == (N_LAYERS, B, HIDDEN_DIM)
    assert c1.shape == (N_LAYERS, B, HIDDEN_DIM)

    pred_r, h_r, c_r = decoder_forward_ref(params, x, hidden, cell)
    assert jnp.allclose(pred, pred_r, atol=1e-4, rtol=1e-4)
    assert jnp.allclose(h1, h_r, atol=1e-4, rtol=1e-4)
    assert jnp.allclose(c1, c_r, atol=1e-4, rtol=1e-4)

    print("KERNEL_OK")
</pallas_src>

<mosaic_0001>
module attributes {stable_mosaic.version = 11 : i64} {
  func.func @_decoder_step_kernel(%arg0: memref<8x128xf32, #tpu.memory_space<vmem>>, %arg1: memref<2x8x128xf32, #tpu.memory_space<vmem>>, %arg2: memref<2x8x128xf32, #tpu.memory_space<vmem>>, %arg3: memref<128x128xf32, #tpu.memory_space<vmem>>, %arg4: memref<1x128xf32, #tpu.memory_space<vmem>>, %arg5: memref<2x256x512xf32, #tpu.memory_space<vmem>>, %arg6: memref<2x1x512xf32, #tpu.memory_space<vmem>>, %arg7: memref<128x128xf32, #tpu.memory_space<vmem>>, %arg8: memref<1x128xf32, #tpu.memory_space<vmem>>, %arg9: memref<8x128xf32, #tpu.memory_space<vmem>>, %arg10: memref<2x8x128xf32, #tpu.memory_space<vmem>>, %arg11: memref<2x8x128xf32, #tpu.memory_space<vmem>>, %arg12: memref<8x256xf32, #tpu.memory_space<vmem>>) attributes {dimension_semantics = [], scalar_prefetch = 0 : i64, scratch_operands = 1 : i64, tpu.core_type = #tpu.core_type<tc>} {
    %c0 = arith.constant 0 : index
    %c0_0 = arith.constant 0 : index
    %0 = vector.load %arg0[%c0, %c0_0] : memref<8x128xf32, #tpu.memory_space<vmem>>, vector<8x128xf32>
    %c0_1 = arith.constant 0 : index
    %c0_2 = arith.constant 0 : index
    %1 = vector.load %arg3[%c0_1, %c0_2] : memref<128x128xf32, #tpu.memory_space<vmem>>, vector<128x128xf32>
    %cst = arith.constant dense<0.000000e+00> : vector<8x128xf32>
    %2 = tpu.matmul %0, %1, %cst {dimension_numbers = #tpu.dot_dimension_numbers<[1], [0], [0], [1], [0, 0, 1, 1], [], []>} : vector<8x128xf32>, vector<128x128xf32>, vector<8x128xf32> -> vector<8x128xf32>
    %c0_3 = arith.constant 0 : index
    %c0_4 = arith.constant 0 : index
    %3 = vector.load %arg4[%c0_3, %c0_4] : memref<1x128xf32, #tpu.memory_space<vmem>>, vector<1x128xf32>
    %4 = vector.broadcast %3 : vector<1x128xf32> to vector<8x128xf32>
    %5 = arith.addf %2, %4 : vector<8x128xf32>
    %c0_5 = arith.constant 0 : index
    %c0_6 = arith.constant 0 : index
    %c0_7 = arith.constant 0 : index
    %6 = vector.load %arg1[%c0_5, %c0_6, %c0_7] : memref<2x8x128xf32, #tpu.memory_space<vmem>>, vector<1x8x128xf32>
    %7 = vector.shape_cast %6 : vector<1x8x128xf32> to vector<8x128xf32>
    %c0_8 = arith.constant 0 : index
    %c0_9 = arith.constant 0 : index
    %c0_10 = arith.constant 0 : index
    %8 = vector.load %arg2[%c0_8, %c0_9, %c0_10] : memref<2x8x128xf32, #tpu.memory_space<vmem>>, vector<1x8x128xf32>
    %9 = vector.shape_cast %8 : vector<1x8x128xf32> to vector<8x128xf32>
    %c0_11 = arith.constant 0 : index
    %c0_12 = arith.constant 0 : index
    %10 = vector.load %arg12[%c0_11, %c0_12] : memref<8x256xf32, #tpu.memory_space<vmem>>, vector<8x128xf32>
    tpu.vector_store %arg12[%c0_11, %c0_12], %5 {strides = array<i32>} : memref<8x256xf32, #tpu.memory_space<vmem>>, vector<8x128xf32>,
    %c0_13 = arith.constant 0 : index
    %c128 = arith.constant 128 : index
    %11 = vector.load %arg12[%c0_13, %c128] : memref<8x256xf32, #tpu.memory_space<vmem>>, vector<8x128xf32>
    tpu.vector_store %arg12[%c0_13, %c128], %7 {strides = array<i32>} : memref<8x256xf32, #tpu.memory_space<vmem>>, vector<8x128xf32>,
    %c0_14 = arith.constant 0 : index
    %c0_15 = arith.constant 0 : index
    %12 = vector.load %arg12[%c0_14, %c0_15] : memref<8x256xf32, #tpu.memory_space<vmem>>, vector<8x256xf32>
    %c0_16 = arith.constant 0 : index
    %c0_17 = arith.constant 0 : index
    %c0_18 = arith.constant 0 : index
    %13 = vector.load %arg5[%c0_16, %c0_17, %c0_18] : memref<2x256x512xf32, #tpu.memory_space<vmem>>, vector<1x256x512xf32>
    %14 = vector.shape_cast %13 : vector<1x256x512xf32> to vector<256x512xf32>
    %cst_19 = arith.constant dense<0.000000e+00> : vector<8x512xf32>
    %15 = tpu.matmul %12, %14, %cst_19 {dimension_numbers = #tpu.dot_dimension_numbers<[1], [0], [0], [1], [0, 0, 1, 1], [], []>} : vector<8x256xf32>, vector<256x512xf32>, vector<8x512xf32> -> vector<8x512xf32>
    %c0_20 = arith.constant 0 : index
    %c0_21 = arith.constant 0 : index
    %c0_22 = arith.constant 0 : index
    %16 = vector.load %arg6[%c0_20, %c0_21, %c0_22] : memref<2x1x512xf32, #tpu.memory_space<vmem>>, vector<1x1x512xf32>
    %17 = vector.shape_cast %16 : vector<1x1x512xf32> to vector<1x512xf32>
    %18 = vector.broadcast %17 : vector<1x512xf32> to vector<8x512xf32>
    %19 = arith.addf %15, %18 : vector<8x512xf32>
    %20 = vector.extract_strided_slice %19 {offsets = [0, 0], sizes = [8, 128], strides = [1, 1]} : vector<8x512xf32> to vector<8x128xf32>
    %21 = arith.negf %20 : vector<8x128xf32>
    %22 = math.exp %21 : vector<8x128xf32>
    %cst_23 = arith.constant 1.000000e+00 : f32
    %23 = vector.broadcast %cst_23 : f32 to vector<8x128xf32>
    %24 = arith.addf %23, %22 : vector<8x128xf32>
    %25 = arith.divf %23, %24 : vector<8x128xf32>
    %26 = vector.extract_strided_slice %19 {offsets = [0, 128], sizes = [8, 128], strides = [1, 1]} : vector<8x512xf32> to vector<8x128xf32>
    %27 = arith.negf %26 : vector<8x128xf32>
    %28 = math.exp %27 : vector<8x128xf32>
    %cst_24 = arith.constant 1.000000e+00 : f32
    %29 = vector.broadcast %cst_24 : f32 to vector<8x128xf32>
    %30 = arith.addf %29, %28 : vector<8x128xf32>
    %31 = arith.divf %29, %30 : vector<8x128xf32>
    %32 = vector.extract_strided_slice %19 {offsets = [0, 256], sizes = [8, 128], strides = [1, 1]} : vector<8x512xf32> to vector<8x128xf32>
    %33 = math.tanh %32 : vector<8x128xf32>
    %34 = vector.extract_strided_slice %19 {offsets = [0, 384], sizes = [8, 128], strides = [1, 1]} : vector<8x512xf32> to vector<8x128xf32>
    %35 = arith.negf %34 : vector<8x128xf32>
    %36 = math.exp %35 : vector<8x128xf32>
    %cst_25 = arith.constant 1.000000e+00 : f32
    %37 = vector.broadcast %cst_25 : f32 to vector<8x128xf32>
    %38 = arith.addf %37, %36 : vector<8x128xf32>
    %39 = arith.divf %37, %38 : vector<8x128xf32>
    %40 = arith.mulf %31, %9 : vector<8x128xf32>
    %41 = arith.mulf %25, %33 : vector<8x128xf32>
    %42 = arith.addf %40, %41 : vector<8x128xf32>
    %43 = math.tanh %42 : vector<8x128xf32>
    %44 = arith.mulf %39, %43 : vector<8x128xf32>
    %c0_26 = arith.constant 0 : index
    %c0_27 = arith.constant 0 : index
    %c0_28 = arith.constant 0 : index
    %45 = vector.load %arg10[%c0_26, %c0_27, %c0_28] : memref<2x8x128xf32, #tpu.memory_space<vmem>>, vector<1x8x128xf32>
    %46 = vector.shape_cast %45 : vector<1x8x128xf32> to vector<8x128xf32>
    %47 = vector.shape_cast %44 : vector<8x128xf32> to vector<1x8x128xf32>
    tpu.vector_store %arg10[%c0_26, %c0_27, %c0_28], %47 {strides = array<i32>} : memref<2x8x128xf32, #tpu.memory_space<vmem>>, vector<1x8x128xf32>,
    %c0_29 = arith.constant 0 : index
    %c0_30 = arith.constant 0 : index
    %c0_31 = arith.constant 0 : index
    %48 = vector.load %arg11[%c0_29, %c0_30, %c0_31] : memref<2x8x128xf32, #tpu.memory_space<vmem>>, vector<1x8x128xf32>
    %49 = vector.shape_cast %48 : vector<1x8x128xf32> to vector<8x128xf32>
    %50 = vector.shape_cast %42 : vector<8x128xf32> to vector<1x8x128xf32>
    tpu.vector_store %arg11[%c0_29, %c0_30, %c0_31], %50 {strides = array<i32>} : memref<2x8x128xf32, #tpu.memory_space<vmem>>, vector<1x8x128xf32>,
    %c1 = arith.constant 1 : index
    %c0_32 = arith.constant 0 : index
    %c0_33 = arith.constant 0 : index
    %51 = vector.load %arg1[%c1, %c0_32, %c0_33] : memref<2x8x128xf32, #tpu.memory_space<vmem>>, vector<1x8x128xf32>
    %52 = vector.shape_cast %51 : vector<1x8x128xf32> to vector<8x128xf32>
    %c1_34 = arith.constant 1 : index
    %c0_35 = arith.constant 0 : index
    %c0_36 = arith.constant 0 : index
    %53 = vector.load %arg2[%c1_34, %c0_35, %c0_36] : memref<2x8x128xf32, #tpu.memory_space<vmem>>, vector<1x8x128xf32>
    %54 = vector.shape_cast %53 : vector<1x8x128xf32> to vector<8x128xf32>
    %c0_37 = arith.constant 0 : index
    %c0_38 = arith.constant 0 : index
    %55 = vector.load %arg12[%c0_37, %c0_38] : memref<8x256xf32, #tpu.memory_space<vmem>>, vector<8x128xf32>
    tpu.vector_store %arg12[%c0_37, %c0_38], %44 {strides = array<i32>} : memref<8x256xf32, #tpu.memory_space<vmem>>, vector<8x128xf32>,
    %c0_39 = arith.constant 0 : index
    %c128_40 = arith.constant 128 : index
    %56 = vector.load %arg12[%c0_39, %c128_40] : memref<8x256xf32, #tpu.memory_space<vmem>>, vector<8x128xf32>
    tpu.vector_store %arg12[%c0_39, %c128_40], %52 {strides = array<i32>} : memref<8x256xf32, #tpu.memory_space<vmem>>, vector<8x128xf32>,
    %c0_41 = arith.constant 0 : index
    %c0_42 = arith.constant 0 : index
    %57 = vector.load %arg12[%c0_41, %c0_42] : memref<8x256xf32, #tpu.memory_space<vmem>>, vector<8x256xf32>
    %c1_43 = arith.constant 1 : index
    %c0_44 = arith.constant 0 : index
    %c0_45 = arith.constant 0 : index
    %58 = vector.load %arg5[%c1_43, %c0_44, %c0_45] : memref<2x256x512xf32, #tpu.memory_space<vmem>>, vector<1x256x512xf32>
    %59 = vector.shape_cast %58 : vector<1x256x512xf32> to vector<256x512xf32>
    %cst_46 = arith.constant dense<0.000000e+00> : vector<8x512xf32>
    %60 = tpu.matmul %57, %59, %cst_46 {dimension_numbers = #tpu.dot_dimension_numbers<[1], [0], [0], [1], [0, 0, 1, 1], [], []>} : vector<8x256xf32>, vector<256x512xf32>, vector<8x512xf32> -> vector<8x512xf32>
    %c1_47 = arith.constant 1 : index
    %c0_48 = arith.constant 0 : index
    %c0_49 = arith.constant 0 : index
    %61 = vector.load %arg6[%c1_47, %c0_48, %c0_49] : memref<2x1x512xf32, #tpu.memory_space<vmem>>, vector<1x1x512xf32>
    %62 = vector.shape_cast %61 : vector<1x1x512xf32> to vector<1x512xf32>
    %63 = vector.broadcast %62 : vector<1x512xf32> to vector<8x512xf32>
    %64 = arith.addf %60, %63 : vector<8x512xf32>
    %65 = vector.extract_strided_slice %64 {offsets = [0, 0], sizes = [8, 128], strides = [1, 1]} : vector<8x512xf32> to vector<8x128xf32>
    %66 = arith.negf %65 : vector<8x128xf32>
    %67 = math.exp %66 : vector<8x128xf32>
    %cst_50 = arith.constant 1.000000e+00 : f32
    %68 = vector.broadcast %cst_50 : f32 to vector<8x128xf32>
    %69 = arith.addf %68, %67 : vector<8x128xf32>
    %70 = arith.divf %68, %69 : vector<8x128xf32>
    %71 = vector.extract_strided_slice %64 {offsets = [0, 128], sizes = [8, 128], strides = [1, 1]} : vector<8x512xf32> to vector<8x128xf32>
    %72 = arith.negf %71 : vector<8x128xf32>
    %73 = math.exp %72 : vector<8x128xf32>
    %cst_51 = arith.constant 1.000000e+00 : f32
    %74 = vector.broadcast %cst_51 : f32 to vector<8x128xf32>
    %75 = arith.addf %74, %73 : vector<8x128xf32>
    %76 = arith.divf %74, %75 : vector<8x128xf32>
    %77 = vector.extract_strided_slice %64 {offsets = [0, 256], sizes = [8, 128], strides = [1, 1]} : vector<8x512xf32> to vector<8x128xf32>
    %78 = math.tanh %77 : vector<8x128xf32>
    %79 = vector.extract_strided_slice %64 {offsets = [0, 384], sizes = [8, 128], strides = [1, 1]} : vector<8x512xf32> to vector<8x128xf32>
    %80 = arith.negf %79 : vector<8x128xf32>
    %81 = math.exp %80 : vector<8x128xf32>
    %cst_52 = arith.constant 1.000000e+00 : f32
    %82 = vector.broadcast %cst_52 : f32 to vector<8x128xf32>
    %83 = arith.addf %82, %81 : vector<8x128xf32>
    %84 = arith.divf %82, %83 : vector<8x128xf32>
    %85 = arith.mulf %76, %54 : vector<8x128xf32>
    %86 = arith.mulf %70, %78 : vector<8x128xf32>
    %87 = arith.addf %85, %86 : vector<8x128xf32>
    %88 = math.tanh %87 : vector<8x128xf32>
    %89 = arith.mulf %84, %88 : vector<8x128xf32>
    %c1_53 = arith.constant 1 : index
    %c0_54 = arith.constant 0 : index
    %c0_55 = arith.constant 0 : index
    %90 = vector.load %arg10[%c1_53, %c0_54, %c0_55] : memref<2x8x128xf32, #tpu.memory_space<vmem>>, vector<1x8x128xf32>
    %91 = vector.shape_cast %90 : vector<1x8x128xf32> to vector<8x128xf32>
    %92 = vector.shape_cast %89 : vector<8x128xf32> to vector<1x8x128xf32>
    tpu.vector_store %arg10[%c1_53, %c0_54, %c0_55], %92 {strides = array<i32>} : memref<2x8x128xf32, #tpu.memory_space<vmem>>, vector<1x8x128xf32>,
    %c1_56 = arith.constant 1 : index
    %c0_57 = arith.constant 0 : index
    %c0_58 = arith.constant 0 : index
    %93 = vector.load %arg11[%c1_56, %c0_57, %c0_58] : memref<2x8x128xf32, #tpu.memory_space<vmem>>, vector<1x8x128xf32>
    %94 = vector.shape_cast %93 : vector<1x8x128xf32> to vector<8x128xf32>
    %95 = vector.shape_cast %87 : vector<8x128xf32> to vector<1x8x128xf32>
    tpu.vector_store %arg11[%c1_56, %c0_57, %c0_58], %95 {strides = array<i32>} : memref<2x8x128xf32, #tpu.memory_space<vmem>>, vector<1x8x128xf32>,
    %c0_59 = arith.constant 0 : index
    %c0_60 = arith.constant 0 : index
    %96 = vector.load %arg7[%c0_59, %c0_60] : memref<128x128xf32, #tpu.memory_space<vmem>>, vector<128x128xf32>
    %cst_61 = arith.constant dense<0.000000e+00> : vector<8x128xf32>
    %97 = tpu.matmul %89, %96, %cst_61 {dimension_numbers = #tpu.dot_dimension_numbers<[1], [0], [0], [1], [0, 0, 1, 1], [], []>} : vector<8x128xf32>, vector<128x128xf32>, vector<8x128xf32> -> vector<8x128xf32>
    %c0_62 = arith.constant 0 : index
    %c0_63 = arith.constant 0 : index
    %98 = vector.load %arg8[%c0_62, %c0_63] : memref<1x128xf32, #tpu.memory_space<vmem>>, vector<1x128xf32>
    %99 = vector.broadcast %98 : vector<1x128xf32> to vector<8x128xf32>
    %100 = arith.addf %97, %99 : vector<8x128xf32>
    %c0_64 = arith.constant 0 : index
    %c0_65 = arith.constant 0 : index
    %101 = vector.load %arg9[%c0_64, %c0_65] : memref<8x128xf32, #tpu.memory_space<vmem>>, vector<8x128xf32>
    tpu.vector_store %arg9[%c0_64, %c0_65], %100 {strides = array<i32>} : memref<8x128xf32, #tpu.memory_space<vmem>>, vector<8x128xf32>,
    return
  }
}

</mosaic_0001>

<llo_original>
// kernel: tpu_custom_call.1
$region0: #{tpu_custom_call.1}
  #allocation0 [shape = 'u32[]', space=smem, size = 0x4, offset = 0x4, fixed_abs, tag = 'smem constant byte address 0x4 - core index']
  #allocation1 [shape = 'u32[144,128]{1,0:T(1,128)}', space=vmem, size = 0x12000, scoped, tag = 'internal scratch']
  #allocation2 [shape = 'f32[8,256]{1,0:T(8,128)}', space=vmem, size = 0x2000, scoped, tag = 'scratch operand']
  %s0 = inlined_call_operand.hbm [shape: f32[8,128], index: 0, kind: input, shape index: {}]
  %s1 = inlined_call_operand.hbm [shape: f32[2,8,128], index: 1, kind: input, shape index: {}]
  %s2 = inlined_call_operand.hbm [shape: f32[2,8,128], index: 2, kind: input, shape index: {}]
  %s3 = inlined_call_operand.hbm [shape: f32[128,128], index: 3, kind: input, shape index: {}]
  %s4 = inlined_call_operand.vmem [shape: f32[1,128], index: 4, kind: input, shape index: {}]
  %s5 = inlined_call_operand.hbm [shape: f32[2,256,512], index: 5, kind: input, shape index: {}]
  %s6 = inlined_call_operand.vmem [shape: f32[2,1,512], index: 6, kind: input, shape index: {}]
  %s7 = inlined_call_operand.hbm [shape: f32[128,128], index: 7, kind: input, shape index: {}]
  %s8 = inlined_call_operand.vmem [shape: f32[1,128], index: 8, kind: input, shape index: {}]
  %s9 = inlined_call_operand.hbm [shape: f32[8,128], index: 9, kind: output, shape index: {0}]
  %s10 = inlined_call_operand.hbm [shape: f32[2,8,128], index: 10, kind: output, shape index: {1}]
  %s11 = inlined_call_operand.hbm [shape: f32[2,8,128], index: 11, kind: output, shape index: {2}]
  %12 = xla_tuple %s9, %s10, %s11
  %s13 = sld [smem:[#allocation0]]
  $region86: #{tpu_custom_call.1} parent=0
    _
  %s15 = ssub.s32 1, %s13
  %s16 = scalar_select 0, %s15, %s13
  $region1: #{tpu_custom_call.1} parent=0
    #allocation3 [shape = 'u8[4096]{0}', space=vmem, size = 0x1000, scoped, tag = 'input window, operand 0, single buffered']
    #allocation4 [shape = 's32[1]{0}', space=sflag, size = 0x4, scoped, tag = 'scoped memory for tpu_custom_call.1']
    #allocation5 [shape = 's32[1]{0}', space=sflag, size = 0x4, scoped, tag = 'scoped memory for tpu_custom_call.1']
    #allocation6 [shape = 'u8[8192]{0}', space=vmem, size = 0x2000, scoped, tag = 'input window, operand 1, single buffered']
    #allocation7 [shape = 's32[1]{0}', space=sflag, size = 0x4, scoped, tag = 'scoped memory for tpu_custom_call.1']
    #allocation8 [shape = 'u8[8192]{0}', space=vmem, size = 0x2000, scoped, tag = 'input window, operand 2, single buffered']
    #allocation9 [shape = 'u8[65536]{0}', space=vmem, size = 0x10000, scoped, tag = 'input window, operand 3, single buffered']
    #allocation10 [shape = 's32[1]{0}', space=sflag, size = 0x4, scoped, tag = 'scoped memory for tpu_custom_call.1']
    #allocation11 [shape = 'u8[1048576]{0}', space=vmem, size = 0x100000, scoped, tag = 'input window, operand 5, single buffered']
    #allocation12 [shape = 'u8[65536]{0}', space=vmem, size = 0x10000, scoped, tag = 'input window, operand 7, single buffered']
    #allocation13 [shape = 's32[1]{0}', space=sflag, size = 0x4, scoped, tag = 'scoped memory for tpu_custom_call.1']
    #allocation14 [shape = 'u8[4096]{0}', space=vmem, size = 0x1000, scoped, tag = 'output window, operand 0, single buffered']
    #allocation15 [shape = 'u8[8192]{0}', space=vmem, size = 0x2000, scoped, tag = 'output window, operand 1, single buffered']
    #allocation16 [shape = 's32[1]{0}', space=sflag, size = 0x4, scoped, tag = 'scoped memory for tpu_custom_call.1']
    #allocation17 [shape = 'u8[8192]{0}', space=vmem, size = 0x2000, scoped, tag = 'output window, operand 2, single buffered']
    %17 = vsyncpa [#allocation4], 0
    %18 = vsyncpa [#allocation7], 0
    %19 = vsyncpa [#allocation10], 0
    %20 = vsyncpa [#allocation13], 0
    %21 = vsyncpa [#allocation5], 0
    %22 = vsyncpa [#allocation16], 0
    // Predicated region
    $region2: #{tpu_custom_call.1} parent=1 // pred_check
      _
    $region3: #{tpu_custom_call.1} parent=1 // pred_check_branch
      %24 = sbr.rel (0) target = $region5
    $region4: #{tpu_custom_call.1} parent=1 // pred_region
      %s26 = ssub.s32 128, 128
      %27 = vsyncadd [#allocation4], %s26
      %s29 = sshll.u32 [#allocation3], 4
      %s30 = int_to_ptr.vmem [resolvable:$true] %s29
      %32 = dma.hbm_to_vmem [thread:$0]  %s0, 128, %s30, [#allocation4]
    $region5: #{tpu_custom_call.1} parent=1 // pred_fallthru
      _
    // Predicated region
    $region6: #{tpu_custom_call.1} parent=1 // pred_check
      _
    $region7: #{tpu_custom_call.1} parent=1 // pred_check_branch
      %34 = sbr.rel (0) target = $region9
    $region8: #{tpu_custom_call.1} parent=1 // pred_region
      %s36 = ssub.s32 256, 256
      %37 = vsyncadd [#allocation7], %s36
      %s38 = sshll.u32 [#allocation6], 4
      %s39 = int_to_ptr.vmem [resolvable:$true] %s38
      %44 = dma.hbm_to_vmem [thread:$0]  %s1, 256, %s39, [#allocation7], 128, 128, 8
    $region9: #{tpu_custom_call.1} parent=1 // pred_fallthru
      _
    // Predicated region
    $region10: #{tpu_custom_call.1} parent=1 // pred_check
      _
    $region11: #{tpu_custom_call.1} parent=1 // pred_check_branch
      %46 = sbr.rel (0) target = $region13
    $region12: #{tpu_custom_call.1} parent=1 // pred_region
      %s48 = ssub.s32 256, 256
      %49 = vsyncadd [#allocation7], %s48
      %s50 = sshll.u32 [#allocation8], 4
      %s51 = int_to_ptr.vmem [resolvable:$true] %s50
      %56 = dma.hbm_to_vmem [thread:$0]  %s2, 256, %s51, [#allocation7], 128, 128, 8
    $region13: #{tpu_custom_call.1} parent=1 // pred_fallthru
      _
    // Predicated region
    $region14: #{tpu_custom_call.1} parent=1 // pred_check
      _
    $region15: #{tpu_custom_call.1} parent=1 // pred_check_branch
      %58 = sbr.rel (0) target = $region17
    $region16: #{tpu_custom_call.1} parent=1 // pred_region
      %s60 = ssub.s32 2048, 2048
      %61 = vsyncadd [#allocation10], %s60
      %s62 = sshll.u32 [#allocation9], 4
      %s63 = int_to_ptr.vmem [resolvable:$true] %s62
      %68 = dma.hbm_to_vmem [thread:$0]  %s3, 2048, %s63, [#allocation10], 128, 128, 8
    $region17: #{tpu_custom_call.1} parent=1 // pred_fallthru
      _
    // Predicated region
    $region18: #{tpu_custom_call.1} parent=1 // pred_check
      _
    $region19: #{tpu_custom_call.1} parent=1 // pred_check_branch
      %70 = sbr.rel (0) target = $region21
    $region20: #{tpu_custom_call.1} parent=1 // pred_region
      _
    $region21: #{tpu_custom_call.1} parent=1 // pred_fallthru
      _
    // Predicated region
    $region22: #{tpu_custom_call.1} parent=1 // pred_check
      _
    $region23: #{tpu_custom_call.1} parent=1 // pred_check_branch
      %72 = sbr.rel (0) target = $region25
    $region24: #{tpu_custom_call.1} parent=1 // pred_region
      %s74 = ssub.s32 32768, 32768
      %75 = vsyncadd [#allocation10], %s74
      %s76 = sshll.u32 [#allocation11], 4
      %s77 = int_to_ptr.vmem [resolvable:$true] %s76
      %82 = dma.hbm_to_vmem [thread:$0]  %s5, 32768, %s77, [#allocation10], 512, 512, 32
    $region25: #{tpu_custom_call.1} parent=1 // pred_fallthru
      _
    // Predicated region
    $region26: #{tpu_custom_call.1} parent=1 // pred_check
      _
    $region27: #{tpu_custom_call.1} parent=1 // pred_check_branch
      %84 = sbr.rel (0) target = $region29
    $region28: #{tpu_custom_call.1} parent=1 // pred_region
      _
    $region29: #{tpu_custom_call.1} parent=1 // pred_fallthru
      _
    // Predicated region
    $region30: #{tpu_custom_call.1} parent=1 // pred_check
      _
    $region31: #{tpu_custom_call.1} parent=1 // pred_check_branch
      %86 = sbr.rel (0) target = $region33
    $region32: #{tpu_custom_call.1} parent=1 // pred_region
      %s88 = ssub.s32 2048, 2048
      %89 = vsyncadd [#allocation13], %s88
      %s90 = sshll.u32 [#allocation12], 4
      %s91 = int_to_ptr.vmem [resolvable:$true] %s90
      %96 = dma.hbm_to_vmem [thread:$0]  %s7, 2048, %s91, [#allocation13], 128, 128, 8
    $region33: #{tpu_custom_call.1} parent=1 // pred_fallthru
      _
    // Predicated region
    $region34: #{tpu_custom_call.1} parent=1 // pred_check
      _
    $region35: #{tpu_custom_call.1} parent=1 // pred_check_branch
      %98 = sbr.rel (0) target = $region37
    $region36: #{tpu_custom_call.1} parent=1 // pred_region
      _
    $region37: #{tpu_custom_call.1} parent=1 // pred_fallthru
      _
    // Predicated region
    $region38: #{tpu_custom_call.1} parent=1 // pred_check
      _
    $region39: #{tpu_custom_call.1} parent=1 // pred_check_branch
      %100 = sbr.rel (0) target = $region41
    $region40: #{tpu_custom_call.1} parent=1 // pred_region
      %101 = dma.done [#allocation4], 128
    $region41: #{tpu_custom_call.1} parent=1 // pred_fallthru
      _
    // Predicated region
    $region42: #{tpu_custom_call.1} parent=1 // pred_check
      _
    $region43: #{tpu_custom_call.1} parent=1 // pred_check_branch
      %103 = sbr.rel (0) target = $region45
    $region44: #{tpu_custom_call.1} parent=1 // pred_region
      %104 = dma.done [#allocation7], 256
    $region45: #{tpu_custom_call.1} parent=1 // pred_fallthru
      _
    // Predicated region
    $region46: #{tpu_custom_call.1} parent=1 // pred_check
      _
    $region47: #{tpu_custom_call.1} parent=1 // pred_check_branch
      %106 = sbr.rel (0) target = $region49
    $region48: #{tpu_custom_call.1} parent=1 // pred_region
      %107 = dma.done [#allocation7], 256
    $region49: #{tpu_custom_call.1} parent=1 // pred_fallthru
      _
    // Predicated region
    $region50: #{tpu_custom_call.1} parent=1 // pred_check
      _
    $region51: #{tpu_custom_call.1} parent=1 // pred_check_branch
      %109 = sbr.rel (0) target = $region53
    $region52: #{tpu_custom_call.1} parent=1 // pred_region
      %110 = dma.done [#allocation10], 2048
    $region53: #{tpu_custom_call.1} parent=1 // pred_fallthru
      _
    // Predicated region
    $region54: #{tpu_custom_call.1} parent=1 // pred_check
      _
    $region55: #{tpu_custom_call.1} parent=1 // pred_check_branch
      %112 = sbr.rel (0) target = $region57
    $region56: #{tpu_custom_call.1} parent=1 // pred_region
      %113 = dma.done [#allocation10], 32768
    $region57: #{tpu_custom_call.1} parent=1 // pred_fallthru
      _
    // Predicated region
    $region58: #{tpu_custom_call.1} parent=1 // pred_check
      _
    $region59: #{tpu_custom_call.1} parent=1 // pred_check_branch
      %115 = sbr.rel (0) target = $region61
    $region60: #{tpu_custom_call.1} parent=1 // pred_region
      %116 = dma.done [#allocation13], 2048
    $region61: #{tpu_custom_call.1} parent=1 // pred_fallthru
      _
    %v117 = vld [vmem:[#allocation3] sm:$0xff]
    %v118 = vld [vmem:[#allocation9] sm:$0xff]
    %v119 = vld [vmem:[#allocation9 + $0x8] sm:$0xff]
    %v120 = vld [vmem:[#allocation9 + $0x10] sm:$0xff]
    %v121 = vld [vmem:[#allocation9 + $0x18] sm:$0xff]
    %v122 = vld [vmem:[#allocation9 + $0x20] sm:$0xff]
    %v123 = vld [vmem:[#allocation9 + $0x28] sm:$0xff]
    %v124 = vld [vmem:[#allocation9 + $0x30] sm:$0xff]
    %v125 = vld [vmem:[#allocation9 + $0x38] sm:$0xff]
    %v126 = vld [vmem:[#allocation9 + $0x40] sm:$0xff]
    %v127 = vld [vmem:[#allocation9 + $0x48] sm:$0xff]
    %v128 = vld [vmem:[#allocation9 + $0x50] sm:$0xff]
    %v129 = vld [vmem:[#allocation9 + $0x58] sm:$0xff]
    %v130 = vld [vmem:[#allocation9 + $0x60] sm:$0xff]
    %v131 = vld [vmem:[#allocation9 + $0x68] sm:$0xff]
    %v132 = vld [vmem:[#allocation9 + $0x70] sm:$0xff]
    %v133 = vld [vmem:[#allocation9 + $0x78] sm:$0xff]
    %v134 = vld [vmem:[%s4] sm:$0x1]
    %v136 = vlaneseq
    %v137 = vshrl.u32 %v136, 7
    %v138 = vsub.s32 0, %v137
    %v139 = vrot.slane %v134, %v138
    %141 = vmatprep.subr.mxu0 0.0
    %142 = vmatpush1.msra.mxu0 %v118
    %143 = vmatprep.subr.mxu0 0.0
    %144 = vmatpush1.msra.mxu0 %v119
    %145 = vmatprep.subr.mxu0 0.0
    %146 = vmatpush1.msra.mxu0 %v120
    %147 = vmatprep.subr.mxu0 0.0
    %148 = vmatpush1.msra.mxu0 %v121
    %149 = vmatprep.subr.mxu0 0.0
    %150 = vmatpush1.msra.mxu0 %v122
    %151 = vmatprep.subr.mxu0 0.0
    %152 = vmatpush1.msra.mxu0 %v123
    %153 = vmatprep.subr.mxu0 0.0
    %154 = vmatpush1.msra.mxu0 %v124
    %155 = vmatprep.subr.mxu0 0.0
    %156 = vmatpush1.msra.mxu0 %v125
    %157 = vmatprep.subr.mxu0 0.0
    %158 = vmatpush1.msra.mxu0 %v126
    %159 = vmatprep.subr.mxu0 0.0
    %160 = vmatpush1.msra.mxu0 %v127
    %161 = vmatprep.subr.mxu0 0.0
    %162 = vmatpush1.msra.mxu0 %v128
    %163 = vmatprep.subr.mxu0 0.0
    %164 = vmatpush1.msra.mxu0 %v129
    %165 = vmatprep.subr.mxu0 0.0
    %166 = vmatpush1.msra.mxu0 %v130
    %167 = vmatprep.subr.mxu0 0.0
    %168 = vmatpush1.msra.mxu0 %v131
    %169 = vmatprep.subr.mxu0 0.0
    %170 = vmatpush1.msra.mxu0 %v132
    %171 = vmatprep.subr.mxu0 0.0
    %172 = vmatpush1.msra.mxu0 %v133
    %173 = vmatprep.subr.mxu0 0.0
    %174 = vmatpush1.msra.mxu0 0.0
    %175 = vmatprep.subr.mxu0 0.0
    %176 = vmatpush1.msra.mxu0 0.0
    %177 = vmatprep.subr.mxu0 0.0
    %178 = vmatpush1.msra.mxu0 0.0
    %179 = vmatprep.subr.mxu0 0.0
    %180 = vmatpush1.msra.mxu0 0.0
    %181 = vmatprep.subr.mxu0 0.0
    %182 = vmatpush1.msra.mxu0 0.0
    %183 = vmatprep.subr.mxu0 0.0
    %184 = vmatpush1.msra.mxu0 0.0
    %185 = vmatprep.subr.mxu0 0.0
    %186 = vmatpush1.msra.mxu0 0.0
    %187 = vmatprep.subr.mxu0 0.0
    %188 = vmatpush1.msra.mxu0 0.0
    %189 = vmatprep.subr.mxu0 0.0
    %190 = vmatpush1.msra.mxu0 0.0
    %191 = vmatprep.subr.mxu0 0.0
    %192 = vmatpush1.msra.mxu0 0.0
    %193 = vmatprep.subr.mxu0 0.0
    %194 = vmatpush1.msra.mxu0 0.0
    %195 = vmatprep.subr.mxu0 0.0
    %196 = vmatpush1.msra.mxu0 0.0
    %197 = vmatprep.subr.mxu0 0.0
    %198 = vmatpush1.msra.mxu0 0.0
    %199 = vmatprep.subr.mxu0 0.0
    %200 = vmatpush1.msra.mxu0 0.0
    %201 = vmatprep.subr.mxu0 0.0
    %202 = vmatpush1.msra.mxu0 0.0
    %203 = vmatprep.subr.mxu0 0.0
    %204 = vmatpush1.msra.mxu0 0.0
    %205 = vmatprep.mubr.f32.mxu0 0.0
    %206 = vmatmul.mubr.f32.gmra.mrb[0].mxu0 %v117
    %v207 = vpop.f32.mrb[0].mxu0
    %v208 = vadd.f32 %v139, %v207
    %v209 = vpop.f32.mrb[0].mxu0
    %210 = vdwg.mxu0
    %v211 = vld [vmem:[#allocation6] sm:$0xff]
    %v212 = vld [vmem:[#allocation8] sm:$0xff]
    %213 = vst [vmem:[#allocation2] sm:$0xff] %v208
    %214 = vst [vmem:[#allocation2 + $0x8] sm:$0xff] %v211
    %v215 = vld [vmem:[#allocation2] sm:$0xff]
    %v216 = vld [vmem:[#allocation2 + $0x8] sm:$0xff]
    %v217 = vld [vmem:[#allocation11] sm:$0xff]
    %v218 = vld [vmem:[#allocation11 + $0x8] sm:$0xff]
    %v219 = vld [vmem:[#allocation11 + $0x10] sm:$0xff]
    %v220 = vld [vmem:[#allocation11 + $0x18] sm:$0xff]
    %v221 = vld [vmem:[#allocation11 + $0x20] sm:$0xff]
    %v222 = vld [vmem:[#allocation11 + $0x28] sm:$0xff]
    %v223 = vld [vmem:[#allocation11 + $0x30] sm:$0xff]
    %v224 = vld [vmem:[#allocation11 + $0x38] sm:$0xff]
    %v225 = vld [vmem:[#allocation11 + $0x40] sm:$0xff]
    %v226 = vld [vmem:[#allocation11 + $0x48] sm:$0xff]
    %v227 = vld [vmem:[#allocation11 + $0x50] sm:$0xff]
    %v228 = vld [vmem:[#allocation11 + $0x58] sm:$0xff]
    %v229 = vld [vmem:[#allocation11 + $0x60] sm:$0xff]
    %v230 = vld [vmem:[#allocation11 + $0x68] sm:$0xff]
    %v231 = vld [vmem:[#allocation11 + $0x70] sm:$0xff]
    %v232 = vld [vmem:[#allocation11 + $0x78] sm:$0xff]
    %v233 = vld [vmem:[#allocation11 + $0x80] sm:$0xff]
    %v234 = vld [vmem:[#allocation11 + $0x88] sm:$0xff]
    %v235 = vld [vmem:[#allocation11 + $0x90] sm:$0xff]
    %v236 = vld [vmem:[#allocation11 + $0x98] sm:$0xff]
    %v237 = vld [vmem:[#allocation11 + $0xa0] sm:$0xff]
    %v238 = vld [vmem:[#allocation11 + $0xa8] sm:$0xff]
    %v239 = vld [vmem:[#allocation11 + $0xb0] sm:$0xff]
    %v240 = vld [vmem:[#allocation11 + $0xb8] sm:$0xff]
    %v241 = vld [vmem:[#allocation11 + $0xc0] sm:$0xff]
    %v242 = vld [vmem:[#allocation11 + $0xc8] sm:$0xff]
    %v243 = vld [vmem:[#allocation11 + $0xd0] sm:$0xff]
    %v244 = vld [vmem:[#allocation11 + $0xd8] sm:$0xff]
    %v245 = vld [vmem:[#allocation11 + $0xe0] sm:$0xff]
    %v246 = vld [vmem:[#allocation11 + $0xe8] sm:$0xff]
    %v247 = vld [vmem:[#allocation11 + $0xf0] sm:$0xff]
    %v248 = vld [vmem:[#allocation11 + $0xf8] sm:$0xff]
    %v249 = vld [vmem:[#allocation11 + $0x100] sm:$0xff]
    %v250 = vld [vmem:[#allocation11 + $0x108] sm:$0xff]
    %v251 = vld [vmem:[#allocation11 + $0x110] sm:$0xff]
    %v252 = vld [vmem:[#allocation11 + $0x118] sm:$0xff]
    %v253 = vld [vmem:[#allocation11 + $0x120] sm:$0xff]
    %v254 = vld [vmem:[#allocation11 + $0x128] sm:$0xff]
    %v255 = vld [vmem:[#allocation11 + $0x130] sm:$0xff]
    %v256 = vld [vmem:[#allocation11 + $0x138] sm:$0xff]
    %v257 = vld [vmem:[#allocation11 + $0x140] sm:$0xff]
    %v258 = vld [vmem:[#allocation11 + $0x148] sm:$0xff]
    %v259 = vld [vmem:[#allocation11 + $0x150] sm:$0xff]
    %v260 = vld [vmem:[#allocation11 + $0x158] sm:$0xff]
    %v261 = vld [vmem:[#allocation11 + $0x160] sm:$0xff]
    %v262 = vld [vmem:[#allocation11 + $0x168] sm:$0xff]
    %v263 = vld [vmem:[#allocation11 + $0x170] sm:$0xff]
    %v264 = vld [vmem:[#allocation11 + $0x178] sm:$0xff]
    %v265 = vld [vmem:[#allocation11 + $0x180] sm:$0xff]
    %v266 = vld [vmem:[#allocation11 + $0x188] sm:$0xff]
    %v267 = vld [vmem:[#allocation11 + $0x190] sm:$0xff]
    %v268 = vld [vmem:[#allocation11 + $0x198] sm:$0xff]
    %v269 = vld [vmem:[#allocation11 + $0x1a0] sm:$0xff]
    %v270 = vld [vmem:[#allocation11 + $0x1a8] sm:$0xff]
    %v271 = vld [vmem:[#allocation11 + $0x1b0] sm:$0xff]
    %v272 = vld [vmem:[#allocation11 + $0x1b8] sm:$0xff]
    %v273 = vld [vmem:[#allocation11 + $0x1c0] sm:$0xff]
    %v274 = vld [vmem:[#allocation11 + $0x1c8] sm:$0xff]
    %v275 = vld [vmem:[#allocation11 + $0x1d0] sm:$0xff]
    %v276 = vld [vmem:[#allocation11 + $0x1d8] sm:$0xff]
    %v277 = vld [vmem:[#allocation11 + $0x1e0] sm:$0xff]
    %v278 = vld [vmem:[#allocation11 + $0x1e8] sm:$0xff]
    %v279 = vld [vmem:[#allocation11 + $0x1f0] sm:$0xff]
    %v280 = vld [vmem:[#allocation11 + $0x1f8] sm:$0xff]
    %v281 = vld [vmem:[#allocation11 + $0x200] sm:$0xff]
    %v282 = vld [vmem:[#allocation11 + $0x208] sm:$0xff]
    %v283 = vld [vmem:[#allocation11 + $0x210] sm:$0xff]
    %v284 = vld [vmem:[#allocation11 + $0x218] sm:$0xff]
    %v285 = vld [vmem:[#allocation11 + $0x220] sm:$0xff]
    %v286 = vld [vmem:[#allocation11 + $0x228] sm:$0xff]
    %v287 = vld [vmem:[#allocation11 + $0x230] sm:$0xff]
    %v288 = vld [vmem:[#allocation11 + $0x238] sm:$0xff]
    %v289 = vld [vmem:[#allocation11 + $0x240] sm:$0xff]
    %v290 = vld [vmem:[#allocation11 + $0x248] sm:$0xff]
    %v291 = vld [vmem:[#allocation11 + $0x250] sm:$0xff]
    %v292 = vld [vmem:[#allocation11 + $0x258] sm:$0xff]
    %v293 = vld [vmem:[#allocation11 + $0x260] sm:$0xff]
    %v294 = vld [vmem:[#allocation11 + $0x268] sm:$0xff]
    %v295 = vld [vmem:[#allocation11 + $0x270] sm:$0xff]
    %v296 = vld [vmem:[#allocation11 + $0x278] sm:$0xff]
    %v297 = vld [vmem:[#allocation11 + $0x280] sm:$0xff]
    %v298 = vld [vmem:[#allocation11 + $0x288] sm:$0xff]
    %v299 = vld [vmem:[#allocation11 + $0x290] sm:$0xff]
    %v300 = vld [vmem:[#allocation11 + $0x298] sm:$0xff]
    %v301 = vld [vmem:[#allocation11 + $0x2a0] sm:$0xff]
    %v302 = vld [vmem:[#allocation11 + $0x2a8] sm:$0xff]
    %v303 = vld [vmem:[#allocation11 + $0x2b0] sm:$0xff]
    %v304 = vld [vmem:[#allocation11 + $0x2b8] sm:$0xff]
    %v305 = vld [vmem:[#allocation11 + $0x2c0] sm:$0xff]
    %v306 = vld [vmem:[#allocation11 + $0x2c8] sm:$0xff]
    %v307 = vld [vmem:[#allocation11 + $0x2d0] sm:$0xff]
    %v308 = vld [vmem:[#allocation11 + $0x2d8] sm:$0xff]
    %v309 = vld [vmem:[#allocation11 + $0x2e0] sm:$0xff]
    %v310 = vld [vmem:[#allocation11 + $0x2e8] sm:$0xff]
    %v311 = vld [vmem:[#allocation11 + $0x2f0] sm:$0xff]
    %v312 = vld [vmem:[#allocation11 + $0x2f8] sm:$0xff]
    %v313 = vld [vmem:[#allocation11 + $0x300] sm:$0xff]
    %v314 = vld [vmem:[#allocation11 + $0x308] sm:$0xff]
    %v315 = vld [vmem:[#allocation11 + $0x310] sm:$0xff]
    %v316 = vld [vmem:[#allocation11 + $0x318] sm:$0xff]
    %v317 = vld [vmem:[#allocation11 + $0x320] sm:$0xff]
    %v318 = vld [vmem:[#allocation11 + $0x328] sm:$0xff]
    %v319 = vld [vmem:[#allocation11 + $0x330] sm:$0xff]
    %v320 = vld [vmem:[#allocation11 + $0x338] sm:$0xff]
    %v321 = vld [vmem:[#allocation11 + $0x340] sm:$0xff]
    %v322 = vld [vmem:[#allocation11 + $0x348] sm:$0xff]
    %v323 = vld [vmem:[#allocation11 + $0x350] sm:$0xff]
    %v324 = vld [vmem:[#allocation11 + $0x358] sm:$0xff]
    %v325 = vld [vmem:[#allocation11 + $0x360] sm:$0xff]
    %v326 = vld [vmem:[#allocation11 + $0x368] sm:$0xff]
    %v327 = vld [vmem:[#allocation11 + $0x370] sm:$0xff]
    %v328 = vld [vmem:[#allocation11 + $0x378] sm:$0xff]
    %v329 = vld [vmem:[#allocation11 + $0x380] sm:$0xff]
    %v330 = vld [vmem:[#allocation11 + $0x388] sm:$0xff]
    %v331 = vld [vmem:[#allocation11 + $0x390] sm:$0xff]
    %v332 = vld [vmem:[#allocation11 + $0x398] sm:$0xff]
    %v333 = vld [vmem:[#allocation11 + $0x3a0] sm:$0xff]
    %v334 = vld [vmem:[#allocation11 + $0x3a8] sm:$0xff]
    %v335 = vld [vmem:[#allocation11 + $0x3b0] sm:$0xff]
    %v336 = vld [vmem:[#allocation11 + $0x3b8] sm:$0xff]
    %v337 = vld [vmem:[#allocation11 + $0x3c0] sm:$0xff]
    %v338 = vld [vmem:[#allocation11 + $0x3c8] sm:$0xff]
    %v339 = vld [vmem:[#allocation11 + $0x3d0] sm:$0xff]
    %v340 = vld [vmem:[#allocation11 + $0x3d8] sm:$0xff]
    %v341 = vld [vmem:[#allocation11 + $0x3e0] sm:$0xff]
    %v342 = vld [vmem:[#allocation11 + $0x3e8] sm:$0xff]
    %v343 = vld [vmem:[#allocation11 + $0x3f0] sm:$0xff]
    %v344 = vld [vmem:[#allocation11 + $0x3f8] sm:$0xff]
    %v345 = vld [vmem:[%s6] sm:$0xf]
    %v347 = vlaneseq
    %v348 = vshrl.u32 %v347, 7
    %v349 = vsub.s32 0, %v348
    %v350 = vrot.slane %v345, %v349
    %v351 = vlaneseq
    %v352 = vshrl.u32 %v351, 7
    %v353 = vsub.s32 1, %v352
    %v354 = vrot.slane %v345, %v353
    %v355 = vlaneseq
    %v356 = vshrl.u32 %v355, 7
    %v357 = vsub.s32 2, %v356
    %v358 = vrot.slane %v345, %v357
    %v359 = vlaneseq
    %v360 = vshrl.u32 %v359, 7
    %v361 = vsub.s32 3, %v360
    %v362 = vrot.slane %v345, %v361
    %367 = vmatprep.subr.mxu0 %v218
    %368 = vmatpush1.msra.mxu0 %v217
    %369 = vmatprep.subr.mxu0 %v222
    %370 = vmatpush1.msra.mxu0 %v221
    %371 = vmatprep.subr.mxu0 %v226
    %372 = vmatpush1.msra.mxu0 %v225
    %373 = vmatprep.subr.mxu0 %v230
    %374 = vmatpush1.msra.mxu0 %v229
    %375 = vmatprep.subr.mxu0 %v234
    %376 = vmatpush1.msra.mxu0 %v233
    %377 = vmatprep.subr.mxu0 %v238
    %378 = vmatpush1.msra.mxu0 %v237
    %379 = vmatprep.subr.mxu0 %v242
    %380 = vmatpush1.msra.mxu0 %v241
    %381 = vmatprep.subr.mxu0 %v246
    %382 = vmatpush1.msra.mxu0 %v245
    %383 = vmatprep.subr.mxu0 %v250
    %384 = vmatpush1.msra.mxu0 %v249
    %385 = vmatprep.subr.mxu0 %v254
    %386 = vmatpush1.msra.mxu0 %v253
    %387 = vmatprep.subr.mxu0 %v258
    %388 = vmatpush1.msra.mxu0 %v257
    %389 = vmatprep.subr.mxu0 %v262
    %390 = vmatpush1.msra.mxu0 %v261
    %391 = vmatprep.subr.mxu0 %v266
    %392 = vmatpush1.msra.mxu0 %v265
    %393 = vmatprep.subr.mxu0 %v270
    %394 = vmatpush1.msra.mxu0 %v269
    %395 = vmatprep.subr.mxu0 %v274
    %396 = vmatpush1.msra.mxu0 %v273
    %397 = vmatprep.subr.mxu0 %v278
    %398 = vmatpush1.msra.mxu0 %v277
    %399 = vmatprep.subr.mxu0 %v282
    %400 = vmatpush1.msra.mxu0 %v281
    %401 = vmatprep.subr.mxu0 %v286
    %402 = vmatpush1.msra.mxu0 %v285
    %403 = vmatprep.subr.mxu0 %v290
    %404 = vmatpush1.msra.mxu0 %v289
    %405 = vmatprep.subr.mxu0 %v294
    %406 = vmatpush1.msra.mxu0 %v293
    %407 = vmatprep.subr.mxu0 %v298
    %408 = vmatpush1.msra.mxu0 %v297
    %409 = vmatprep.subr.mxu0 %v302
    %410 = vmatpush1.msra.mxu0 %v301
    %411 = vmatprep.subr.mxu0 %v306
    %412 = vmatpush1.msra.mxu0 %v305
    %413 = vmatprep.subr.mxu0 %v310
    %414 = vmatpush1.msra.mxu0 %v309
    %415 = vmatprep.subr.mxu0 %v314
    %416 = vmatpush1.msra.mxu0 %v313
    %417 = vmatprep.subr.mxu0 %v318
    %418 = vmatpush1.msra.mxu0 %v317
    %419 = vmatprep.subr.mxu0 %v322
    %420 = vmatpush1.msra.mxu0 %v321
    %421 = vmatprep.subr.mxu0 %v326
    %422 = vmatpush1.msra.mxu0 %v325
    %423 = vmatprep.subr.mxu0 %v330
    %424 = vmatpush1.msra.mxu0 %v329
    %425 = vmatprep.subr.mxu0 %v334
    %426 = vmatpush1.msra.mxu0 %v333
    %427 = vmatprep.subr.mxu0 %v338
    %428 = vmatpush1.msra.mxu0 %v337
    %429 = vmatprep.subr.mxu0 %v342
    %430 = vmatpush1.msra.mxu0 %v341
    %431 = vmatprep.mubr.f32.mxu0 %v216
    %432 = vmatmul.mubr.f32.gmra.mrb[0].mxu0 %v215
    %v433 = vpop.f32.mrb[0].mxu0
    %v434 = vadd.f32 %v350, %v433
    %v435 = vpop.f32.mrb[0].mxu0
    %v436 = vadd.f32 %v354, %v435
    %437 = vdwg.mxu0
    %438 = vmatprep.subr.mxu0 %v220
    %439 = vmatpush1.msra.mxu0 %v219
    %440 = vmatprep.subr.mxu0 %v224
    %441 = vmatpush1.msra.mxu0 %v223
    %442 = vmatprep.subr.mxu0 %v228
    %443 = vmatpush1.msra.mxu0 %v227
    %444 = vmatprep.subr.mxu0 %v232
    %445 = vmatpush1.msra.mxu0 %v231
    %446 = vmatprep.subr.mxu0 %v236
    %447 = vmatpush1.msra.mxu0 %v235
    %448 = vmatprep.subr.mxu0 %v240
    %449 = vmatpush1.msra.mxu0 %v239
    %450 = vmatprep.subr.mxu0 %v244
    %451 = vmatpush1.msra.mxu0 %v243
    %452 = vmatprep.subr.mxu0 %v248
    %453 = vmatpush1.msra.mxu0 %v247
    %454 = vmatprep.subr.mxu0 %v252
    %455 = vmatpush1.msra.mxu0 %v251
    %456 = vmatprep.subr.mxu0 %v256
    %457 = vmatpush1.msra.mxu0 %v255
    %458 = vmatprep.subr.mxu0 %v260
    %459 = vmatpush1.msra.mxu0 %v259
    %460 = vmatprep.subr.mxu0 %v264
    %461 = vmatpush1.msra.mxu0 %v263
    %462 = vmatprep.subr.mxu0 %v268
    %463 = vmatpush1.msra.mxu0 %v267
    %464 = vmatprep.subr.mxu0 %v272
    %465 = vmatpush1.msra.mxu0 %v271
    %466 = vmatprep.subr.mxu0 %v276
    %467 = vmatpush1.msra.mxu0 %v275
    %468 = vmatprep.subr.mxu0 %v280
    %469 = vmatpush1.msra.mxu0 %v279
    %470 = vmatprep.subr.mxu0 %v284
    %471 = vmatpush1.msra.mxu0 %v283
    %472 = vmatprep.subr.mxu0 %v288
    %473 = vmatpush1.msra.mxu0 %v287
    %474 = vmatprep.subr.mxu0 %v292
    %475 = vmatpush1.msra.mxu0 %v291
    %476 = vmatprep.subr.mxu0 %v296
    %477 = vmatpush1.msra.mxu0 %v295
    %478 = vmatprep.subr.mxu0 %v300
    %479 = vmatpush1.msra.mxu0 %v299
    %480 = vmatprep.subr.mxu0 %v304
    %481 = vmatpush1.msra.mxu0 %v303
    %482 = vmatprep.subr.mxu0 %v308
    %483 = vmatpush1.msra.mxu0 %v307
    %484 = vmatprep.subr.mxu0 %v312
    %485 = vmatpush1.msra.mxu0 %v311
    %486 = vmatprep.subr.mxu0 %v316
    %487 = vmatpush1.msra.mxu0 %v315
    %488 = vmatprep.subr.mxu0 %v320
    %489 = vmatpush1.msra.mxu0 %v319
    %490 = vmatprep.subr.mxu0 %v324
    %491 = vmatpush1.msra.mxu0 %v323
    %492 = vmatprep.subr.mxu0 %v328
    %493 = vmatpush1.msra.mxu0 %v327
    %494 = vmatprep.subr.mxu0 %v332
    %495 = vmatpush1.msra.mxu0 %v331
    %496 = vmatprep.subr.mxu0 %v336
    %497 = vmatpush1.msra.mxu0 %v335
    %498 = vmatprep.subr.mxu0 %v340
    %499 = vmatpush1.msra.mxu0 %v339
    %500 = vmatprep.subr.mxu0 %v344
    %501 = vmatpush1.msra.mxu0 %v343
    %502 = vmatprep.mubr.f32.mxu0 %v216
    %503 = vmatmul.mubr.f32.gmra.mrb[0].mxu0 %v215
    %v504 = vpop.f32.mrb[0].mxu0
    %v505 = vadd.f32 %v358, %v504
    %v506 = vpop.f32.mrb[0].mxu0
    %v507 = vadd.f32 %v362, %v506
    %508 = vdwg.mxu0
    %v509 = vxor.u32 %v434, 2147483648
    %v510 = vmul.f32 %v509, 1.442695
    %v511 = vpow.pop %v510
    %v512 = vadd.f32 %v511, 1.0
    %v513 = vrcp.pop %v512
    %v514 = vmul.f32 1.0, %v513
    %v515 = vxor.u32 %v436, 2147483648
    %v516 = vmul.f32 %v515, 1.442695
    %v517 = vpow.pop %v516
    %v518 = vadd.f32 %v517, 1.0
    %v519 = vrcp.pop %v518
    %v520 = vmul.f32 1.0, %v519
    %v521 = vtanh.pop %v505
    %v522 = vxor.u32 %v507, 2147483648
    %v523 = vmul.f32 %v522, 1.442695
    %v524 = vpow.pop %v523
    %v525 = vadd.f32 %v524, 1.0
    %v526 = vrcp.pop %v525
    %v527 = vmul.f32 1.0, %v526
    %v528 = vmul.f32 %v520, %v212
    %v529 = vmul.f32 %v514, %v521
    %v530 = vadd.f32 %v528, %v529
    %v531 = vtanh.pop %v530
    %v532 = vmul.f32 %v527, %v531
    %533 = vst [vmem:[#allocation15] sm:$0xff] %v532
    %534 = vst [vmem:[#allocation17] sm:$0xff] %v530
    %s535 = scalar_lea.vmem [#allocation6], 8
    %v536 = vld [vmem:[%s535] sm:$0xff]
    %s537 = scalar_lea.vmem [#allocation8], 8
    %v538 = vld [vmem:[%s537] sm:$0xff]
    %539 = vst [vmem:[#allocation2] sm:$0xff] %v532
    %540 = vst [vmem:[#allocation2 + $0x8] sm:$0xff] %v536
    %v541 = vld [vmem:[#allocation2] sm:$0xff]
    %v542 = vld [vmem:[#allocation2 + $0x8] sm:$0xff]
    %s543 = scalar_lea.vmem [#allocation11], 1024
    %v544 = vld [vmem:[%s543] sm:$0xff]
    %v545 = vld [vmem:[%s543 + $0x8] sm:$0xff]
    %v546 = vld [vmem:[%s543 + $0x10] sm:$0xff]
    %v547 = vld [vmem:[%s543 + $0x18] sm:$0xff]
    %v548 = vld [vmem:[%s543 + $0x20] sm:$0xff]
    %v549 = vld [vmem:[%s543 + $0x28] sm:$0xff]
    %v550 = vld [vmem:[%s543 + $0x30] sm:$0xff]
    %v551 = vld [vmem:[%s543 + $0x38] sm:$0xff]
    %v552 = vld [vmem:[%s543 + $0x40] sm:$0xff]
    %v553 = vld [vmem:[%s543 + $0x48] sm:$0xff]
    %v554 = vld [vmem:[%s543 + $0x50] sm:$0xff]
    %v555 = vld [vmem:[%s543 + $0x58] sm:$0xff]
    %v556 = vld [vmem:[%s543 + $0x60] sm:$0xff]
    %v557 = vld [vmem:[%s543 + $0x68] sm:$0xff]
    %v558 = vld [vmem:[%s543 + $0x70] sm:$0xff]
    %v559 = vld [vmem:[%s543 + $0x78] sm:$0xff]
    %v560 = vld [vmem:[%s543 + $0x80] sm:$0xff]
    %v561 = vld [vmem:[%s543 + $0x88] sm:$0xff]
    %v562 = vld [vmem:[%s543 + $0x90] sm:$0xff]
    %v563 = vld [vmem:[%s543 + $0x98] sm:$0xff]
    %v564 = vld [vmem:[%s543 + $0xa0] sm:$0xff]
    %v565 = vld [vmem:[%s543 + $0xa8] sm:$0xff]
    %v566 = vld [vmem:[%s543 + $0xb0] sm:$0xff]
    %v567 = vld [vmem:[%s543 + $0xb8] sm:$0xff]
    %v568 = vld [vmem:[%s543 + $0xc0] sm:$0xff]
    %v569 = vld [vmem:[%s543 + $0xc8] sm:$0xff]
    %v570 = vld [vmem:[%s543 + $0xd0] sm:$0xff]
    %v571 = vld [vmem:[%s543 + $0xd8] sm:$0xff]
    %v572 = vld [vmem:[%s543 + $0xe0] sm:$0xff]
    %v573 = vld [vmem:[%s543 + $0xe8] sm:$0xff]
    %v574 = vld [vmem:[%s543 + $0xf0] sm:$0xff]
    %v575 = vld [vmem:[%s543 + $0xf8] sm:$0xff]
    %v576 = vld [vmem:[%s543 + $0x100] sm:$0xff]
    %v577 = vld [vmem:[%s543 + $0x108] sm:$0xff]
    %v578 = vld [vmem:[%s543 + $0x110] sm:$0xff]
    %v579 = vld [vmem:[%s543 + $0x118] sm:$0xff]
    %v580 = vld [vmem:[%s543 + $0x120] sm:$0xff]
    %v581 = vld [vmem:[%s543 + $0x128] sm:$0xff]
    %v582 = vld [vmem:[%s543 + $0x130] sm:$0xff]
    %v583 = vld [vmem:[%s543 + $0x138] sm:$0xff]
    %v584 = vld [vmem:[%s543 + $0x140] sm:$0xff]
    %v585 = vld [vmem:[%s543 + $0x148] sm:$0xff]
    %v586 = vld [vmem:[%s543 + $0x150] sm:$0xff]
    %v587 = vld [vmem:[%s543 + $0x158] sm:$0xff]
    %v588 = vld [vmem:[%s543 + $0x160] sm:$0xff]
    %v589 = vld [vmem:[%s543 + $0x168] sm:$0xff]
    %v590 = vld [vmem:[%s543 + $0x170] sm:$0xff]
    %v591 = vld [vmem:[%s543 + $0x178] sm:$0xff]
    %v592 = vld [vmem:[%s543 + $0x180] sm:$0xff]
    %v593 = vld [vmem:[%s543 + $0x188] sm:$0xff]
    %v594 = vld [vmem:[%s543 + $0x190] sm:$0xff]
    %v595 = vld [vmem:[%s543 + $0x198] sm:$0xff]
    %v596 = vld [vmem:[%s543 + $0x1a0] sm:$0xff]
    %v597 = vld [vmem:[%s543 + $0x1a8] sm:$0xff]
    %v598 = vld [vmem:[%s543 + $0x1b0] sm:$0xff]
    %v599 = vld [vmem:[%s543 + $0x1b8] sm:$0xff]
    %v600 = vld [vmem:[%s543 + $0x1c0] sm:$0xff]
    %v601 = vld [vmem:[%s543 + $0x1c8] sm:$0xff]
    %v602 = vld [vmem:[%s543 + $0x1d0] sm:$0xff]
    %v603 = vld [vmem:[%s543 + $0x1d8] sm:$0xff]
    %v604 = vld [vmem:[%s543 + $0x1e0] sm:$0xff]
    %v605 = vld [vmem:[%s543 + $0x1e8] sm:$0xff]
    %v606 = vld [vmem:[%s543 + $0x1f0] sm:$0xff]
    %v607 = vld [vmem:[%s543 + $0x1f8] sm:$0xff]
    %v608 = vld [vmem:[%s543 + $0x200] sm:$0xff]
    %v609 = vld [vmem:[%s543 + $0x208] sm:$0xff]
    %v610 = vld [vmem:[%s543 + $0x210] sm:$0xff]
    %v611 = vld [vmem:[%s543 + $0x218] sm:$0xff]
    %v612 = vld [vmem:[%s543 + $0x220] sm:$0xff]
    %v613 = vld [vmem:[%s543 + $0x228] sm:$0xff]
    %v614 = vld [vmem:[%s543 + $0x230] sm:$0xff]
    %v615 = vld [vmem:[%s543 + $0x238] sm:$0xff]
    %v616 = vld [vmem:[%s543 + $0x240] sm:$0xff]
    %v617 = vld [vmem:[%s543 + $0x248] sm:$0xff]
    %v618 = vld [vmem:[%s543 + $0x250] sm:$0xff]
    %v619 = vld [vmem:[%s543 + $0x258] sm:$0xff]
    %v620 = vld [vmem:[%s543 + $0x260] sm:$0xff]
    %v621 = vld [vmem:[%s543 + $0x268] sm:$0xff]
    %v622 = vld [vmem:[%s543 + $0x270] sm:$0xff]
    %v623 = vld [vmem:[%s543 + $0x278] sm:$0xff]
    %v624 = vld [vmem:[%s543 + $0x280] sm:$0xff]
    %v625 = vld [vmem:[%s543 + $0x288] sm:$0xff]
    %v626 = vld [vmem:[%s543 + $0x290] sm:$0xff]
    %v627 = vld [vmem:[%s543 + $0x298] sm:$0xff]
    %v628 = vld [vmem:[%s543 + $0x2a0] sm:$0xff]
    %v629 = vld [vmem:[%s543 + $0x2a8] sm:$0xff]
    %v630 = vld [vmem:[%s543 + $0x2b0] sm:$0xff]
    %v631 = vld [vmem:[%s543 + $0x2b8] sm:$0xff]
    %v632 = vld [vmem:[%s543 + $0x2c0] sm:$0xff]
    %v633 = vld [vmem:[%s543 + $0x2c8] sm:$0xff]
    %v634 = vld [vmem:[%s543 + $0x2d0] sm:$0xff]
    %v635 = vld [vmem:[%s543 + $0x2d8] sm:$0xff]
    %v636 = vld [vmem:[%s543 + $0x2e0] sm:$0xff]
    %v637 = vld [vmem:[%s543 + $0x2e8] sm:$0xff]
    %v638 = vld [vmem:[%s543 + $0x2f0] sm:$0xff]
    %v639 = vld [vmem:[%s543 + $0x2f8] sm:$0xff]
    %v640 = vld [vmem:[%s543 + $0x300] sm:$0xff]
    %v641 = vld [vmem:[%s543 + $0x308] sm:$0xff]
    %v642 = vld [vmem:[%s543 + $0x310] sm:$0xff]
    %v643 = vld [vmem:[%s543 + $0x318] sm:$0xff]
    %v644 = vld [vmem:[%s543 + $0x320] sm:$0xff]
    %v645 = vld [vmem:[%s543 + $0x328] sm:$0xff]
    %v646 = vld [vmem:[%s543 + $0x330] sm:$0xff]
    %v647 = vld [vmem:[%s543 + $0x338] sm:$0xff]
    %v648 = vld [vmem:[%s543 + $0x340] sm:$0xff]
    %v649 = vld [vmem:[%s543 + $0x348] sm:$0xff]
    %v650 = vld [vmem:[%s543 + $0x350] sm:$0xff]
    %v651 = vld [vmem:[%s543 + $0x358] sm:$0xff]
    %v652 = vld [vmem:[%s543 + $0x360] sm:$0xff]
    %v653 = vld [vmem:[%s543 + $0x368] sm:$0xff]
    %v654 = vld [vmem:[%s543 + $0x370] sm:$0xff]
    %v655 = vld [vmem:[%s543 + $0x378] sm:$0xff]
    %v656 = vld [vmem:[%s543 + $0x380] sm:$0xff]
    %v657 = vld [vmem:[%s543 + $0x388] sm:$0xff]
    %v658 = vld [vmem:[%s543 + $0x390] sm:$0xff]
    %v659 = vld [vmem:[%s543 + $0x398] sm:$0xff]
    %v660 = vld [vmem:[%s543 + $0x3a0] sm:$0xff]
    %v661 = vld [vmem:[%s543 + $0x3a8] sm:$0xff]
    %v662 = vld [vmem:[%s543 + $0x3b0] sm:$0xff]
    %v663 = vld [vmem:[%s543 + $0x3b8] sm:$0xff]
    %v664 = vld [vmem:[%s543 + $0x3c0] sm:$0xff]
    %v665 = vld [vmem:[%s543 + $0x3c8] sm:$0xff]
    %v666 = vld [vmem:[%s543 + $0x3d0] sm:$0xff]
    %v667 = vld [vmem:[%s543 + $0x3d8] sm:$0xff]
    %v668 = vld [vmem:[%s543 + $0x3e0] sm:$0xff]
    %v669 = vld [vmem:[%s543 + $0x3e8] sm:$0xff]
    %v670 = vld [vmem:[%s543 + $0x3f0] sm:$0xff]
    %v671 = vld [vmem:[%s543 + $0x3f8] sm:$0xff]
    %s672 = scalar_lea.vmem %s6, 4
    %v673 = vld [vmem:[%s672] sm:$0xf]
    %v675 = vlaneseq
    %v676 = vshrl.u32 %v675, 7
    %v677 = vsub.s32 0, %v676
    %v678 = vrot.slane %v673, %v677
    %v679 = vlaneseq
    %v680 = vshrl.u32 %v679, 7
    %v681 = vsub.s32 1, %v680
    %v682 = vrot.slane %v673, %v681
    %v683 = vlaneseq
    %v684 = vshrl.u32 %v683, 7
    %v685 = vsub.s32 2, %v684
    %v686 = vrot.slane %v673, %v685
    %v687 = vlaneseq
    %v688 = vshrl.u32 %v687, 7
    %v689 = vsub.s32 3, %v688
    %v690 = vrot.slane %v673, %v689
    %695 = vmatprep.subr.mxu0 %v545
    %696 = vmatpush1.msra.mxu0 %v544
    %697 = vmatprep.subr.mxu0 %v549
    %698 = vmatpush1.msra.mxu0 %v548
    %699 = vmatprep.subr.mxu0 %v553
    %700 = vmatpush1.msra.mxu0 %v552
    %701 = vmatprep.subr.mxu0 %v557
    %702 = vmatpush1.msra.mxu0 %v556
    %703 = vmatprep.subr.mxu0 %v561
    %704 = vmatpush1.msra.mxu0 %v560
    %705 = vmatprep.subr.mxu0 %v565
    %706 = vmatpush1.msra.mxu0 %v564
    %707 = vmatprep.subr.mxu0 %v569
    %708 = vmatpush1.msra.mxu0 %v568
    %709 = vmatprep.subr.mxu0 %v573
    %710 = vmatpush1.msra.mxu0 %v572
    %711 = vmatprep.subr.mxu0 %v577
    %712 = vmatpush1.msra.mxu0 %v576
    %713 = vmatprep.subr.mxu0 %v581
    %714 = vmatpush1.msra.mxu0 %v580
    %715 = vmatprep.subr.mxu0 %v585
    %716 = vmatpush1.msra.mxu0 %v584
    %717 = vmatprep.subr.mxu0 %v589
    %718 = vmatpush1.msra.mxu0 %v588
    %719 = vmatprep.subr.mxu0 %v593
    %720 = vmatpush1.msra.mxu0 %v592
    %721 = vmatprep.subr.mxu0 %v597
    %722 = vmatpush1.msra.mxu0 %v596
    %723 = vmatprep.subr.mxu0 %v601
    %724 = vmatpush1.msra.mxu0 %v600
    %725 = vmatprep.subr.mxu0 %v605
    %726 = vmatpush1.msra.mxu0 %v604
    %727 = vmatprep.subr.mxu0 %v609
    %728 = vmatpush1.msra.mxu0 %v608
    %729 = vmatprep.subr.mxu0 %v613
    %730 = vmatpush1.msra.mxu0 %v612
    %731 = vmatprep.subr.mxu0 %v617
    %732 = vmatpush1.msra.mxu0 %v616
    %733 = vmatprep.subr.mxu0 %v621
    %734 = vmatpush1.msra.mxu0 %v620
    %735 = vmatprep.subr.mxu0 %v625
    %736 = vmatpush1.msra.mxu0 %v624
    %737 = vmatprep.subr.mxu0 %v629
    %738 = vmatpush1.msra.mxu0 %v628
    %739 = vmatprep.subr.mxu0 %v633
    %740 = vmatpush1.msra.mxu0 %v632
    %741 = vmatprep.subr.mxu0 %v637
    %742 = vmatpush1.msra.mxu0 %v636
    %743 = vmatprep.subr.mxu0 %v641
    %744 = vmatpush1.msra.mxu0 %v640
    %745 = vmatprep.subr.mxu0 %v645
    %746 = vmatpush1.msra.mxu0 %v644
    %747 = vmatprep.subr.mxu0 %v649
    %748 = vmatpush1.msra.mxu0 %v648
    %749 = vmatprep.subr.mxu0 %v653
    %750 = vmatpush1.msra.mxu0 %v652
    %751 = vmatprep.subr.mxu0 %v657
    %752 = vmatpush1.msra.mxu0 %v656
    %753 = vmatprep.subr.mxu0 %v661
    %754 = vmatpush1.msra.mxu0 %v660
    %755 = vmatprep.subr.mxu0 %v665
    %756 = vmatpush1.msra.mxu0 %v664
    %757 = vmatprep.subr.mxu0 %v669
    %758 = vmatpush1.msra.mxu0 %v668
    %759 = vmatprep.mubr.f32.mxu0 %v542
    %760 = vmatmul.mubr.f32.gmra.mrb[0].mxu0 %v541
    %v761 = vpop.f32.mrb[0].mxu0
    %v762 = vadd.f32 %v678, %v761
    %v763 = vpop.f32.mrb[0].mxu0
    %v764 = vadd.f32 %v682, %v763
    %765 = vdwg.mxu0
    %766 = vmatprep.subr.mxu0 %v547
    %767 = vmatpush1.msra.mxu0 %v546
    %768 = vmatprep.subr.mxu0 %v551
    %769 = vmatpush1.msra.mxu0 %v550
    %770 = vmatprep.subr.mxu0 %v555
    %771 = vmatpush1.msra.mxu0 %v554
    %772 = vmatprep.subr.mxu0 %v559
    %773 = vmatpush1.msra.mxu0 %v558
    %774 = vmatprep.subr.mxu0 %v563
    %775 = vmatpush1.msra.mxu0 %v562
    %776 = vmatprep.subr.mxu0 %v567
    %777 = vmatpush1.msra.mxu0 %v566
    %778 = vmatprep.subr.mxu0 %v571
    %779 = vmatpush1.msra.mxu0 %v570
    %780 = vmatprep.subr.mxu0 %v575
    %781 = vmatpush1.msra.mxu0 %v574
    %782 = vmatprep.subr.mxu0 %v579
    %783 = vmatpush1.msra.mxu0 %v578
    %784 = vmatprep.subr.mxu0 %v583
    %785 = vmatpush1.msra.mxu0 %v582
    %786 = vmatprep.subr.mxu0 %v587
    %787 = vmatpush1.msra.mxu0 %v586
    %788 = vmatprep.subr.mxu0 %v591
    %789 = vmatpush1.msra.mxu0 %v590
    %790 = vmatprep.subr.mxu0 %v595
    %791 = vmatpush1.msra.mxu0 %v594
    %792 = vmatprep.subr.mxu0 %v599
    %793 = vmatpush1.msra.mxu0 %v598
    %794 = vmatprep.subr.mxu0 %v603
    %795 = vmatpush1.msra.mxu0 %v602
    %796 = vmatprep.subr.mxu0 %v607
    %797 = vmatpush1.msra.mxu0 %v606
    %798 = vmatprep.subr.mxu0 %v611
    %799 = vmatpush1.msra.mxu0 %v610
    %800 = vmatprep.subr.mxu0 %v615
    %801 = vmatpush1.msra.mxu0 %v614
    %802 = vmatprep.subr.mxu0 %v619
    %803 = vmatpush1.msra.mxu0 %v618
    %804 = vmatprep.subr.mxu0 %v623
    %805 = vmatpush1.msra.mxu0 %v622
    %806 = vmatprep.subr.mxu0 %v627
    %807 = vmatpush1.msra.mxu0 %v626
    %808 = vmatprep.subr.mxu0 %v631
    %809 = vmatpush1.msra.mxu0 %v630
    %810 = vmatprep.subr.mxu0 %v635
    %811 = vmatpush1.msra.mxu0 %v634
    %812 = vmatprep.subr.mxu0 %v639
    %813 = vmatpush1.msra.mxu0 %v638
    %814 = vmatprep.subr.mxu0 %v643
    %815 = vmatpush1.msra.mxu0 %v642
    %816 = vmatprep.subr.mxu0 %v647
    %817 = vmatpush1.msra.mxu0 %v646
    %818 = vmatprep.subr.mxu0 %v651
    %819 = vmatpush1.msra.mxu0 %v650
    %820 = vmatprep.subr.mxu0 %v655
    %821 = vmatpush1.msra.mxu0 %v654
    %822 = vmatprep.subr.mxu0 %v659
    %823 = vmatpush1.msra.mxu0 %v658
    %824 = vmatprep.subr.mxu0 %v663
    %825 = vmatpush1.msra.mxu0 %v662
    %826 = vmatprep.subr.mxu0 %v667
    %827 = vmatpush1.msra.mxu0 %v666
    %828 = vmatprep.subr.mxu0 %v671
    %829 = vmatpush1.msra.mxu0 %v670
    %830 = vmatprep.mubr.f32.mxu0 %v542
    %831 = vmatmul.mubr.f32.gmra.mrb[0].mxu0 %v541
    %v832 = vpop.f32.mrb[0].mxu0
    %v833 = vadd.f32 %v686, %v832
    %v834 = vpop.f32.mrb[0].mxu0
    %v835 = vadd.f32 %v690, %v834
    %836 = vdwg.mxu0
    %v837 = vxor.u32 %v762, 2147483648
    %v838 = vmul.f32 %v837, 1.442695
    %v839 = vpow.pop %v838
    %v840 = vadd.f32 %v839, 1.0
    %v841 = vrcp.pop %v840
    %v842 = vmul.f32 1.0, %v841
    %v843 = vxor.u32 %v764, 2147483648
    %v844 = vmul.f32 %v843, 1.442695
    %v845 = vpow.pop %v844
    %v846 = vadd.f32 %v845, 1.0
    %v847 = vrcp.pop %v846
    %v848 = vmul.f32 1.0, %v847
    %v849 = vtanh.pop %v833
    %v850 = vxor.u32 %v835, 2147483648
    %v851 = vmul.f32 %v850, 1.442695
    %v852 = vpow.pop %v851
    %v853 = vadd.f32 %v852, 1.0
    %v854 = vrcp.pop %v853
    %v855 = vmul.f32 1.0, %v854
    %v856 = vmul.f32 %v848, %v538
    %v857 = vmul.f32 %v842, %v849
    %v858 = vadd.f32 %v856, %v857
    %v859 = vtanh.pop %v858
    %v860 = vmul.f32 %v855, %v859
    %s861 = scalar_lea.vmem [#allocation15], 8
    %862 = vst [vmem:[%s861] sm:$0xff] %v860
    %s863 = scalar_lea.vmem [#allocation17], 8
    %864 = vst [vmem:[%s863] sm:$0xff] %v858
    %v865 = vld [vmem:[#allocation12] sm:$0xff]
    %v866 = vld [vmem:[#allocation12 + $0x8] sm:$0xff]
    %v867 = vld [vmem:[#allocation12 + $0x10] sm:$0xff]
    %v868 = vld [vmem:[#allocation12 + $0x18] sm:$0xff]
    %v869 = vld [vmem:[#allocation12 + $0x20] sm:$0xff]
    %v870 = vld [vmem:[#allocation12 + $0x28] sm:$0xff]
    %v871 = vld [vmem:[#allocation12 + $0x30] sm:$0xff]
    %v872 = vld [vmem:[#allocation12 + $0x38] sm:$0xff]
    %v873 = vld [vmem:[#allocation12 + $0x40] sm:$0xff]
    %v874 = vld [vmem:[#allocation12 + $0x48] sm:$0xff]
    %v875 = vld [vmem:[#allocation12 + $0x50] sm:$0xff]
    %v876 = vld [vmem:[#allocation12 + $0x58] sm:$0xff]
    %v877 = vld [vmem:[#allocation12 + $0x60] sm:$0xff]
    %v878 = vld [vmem:[#allocation12 + $0x68] sm:$0xff]
    %v879 = vld [vmem:[#allocation12 + $0x70] sm:$0xff]
    %v880 = vld [vmem:[#allocation12 + $0x78] sm:$0xff]
    %v881 = vld [vmem:[%s8] sm:$0x1]
    %v883 = vlaneseq
    %v884 = vshrl.u32 %v883, 7
    %v885 = vsub.s32 0, %v884
    %v886 = vrot.slane %v881, %v885
    %888 = vmatprep.subr.mxu0 0.0
    %889 = vmatpush1.msra.mxu0 %v865
    %890 = vmatprep.subr.mxu0 0.0
    %891 = vmatpush1.msra.mxu0 %v866
    %892 = vmatprep.subr.mxu0 0.0
    %893 = vmatpush1.msra.mxu0 %v867
    %894 = vmatprep.subr.mxu0 0.0
    %895 = vmatpush1.msra.mxu0 %v868
    %896 = vmatprep.subr.mxu0 0.0
    %897 = vmatpush1.msra.mxu0 %v869
    %898 = vmatprep.subr.mxu0 0.0
    %899 = vmatpush1.msra.mxu0 %v870
    %900 = vmatprep.subr.mxu0 0.0
    %901 = vmatpush1.msra.mxu0 %v871
    %902 = vmatprep.subr.mxu0 0.0
    %903 = vmatpush1.msra.mxu0 %v872
    %904 = vmatprep.subr.mxu0 0.0
    %905 = vmatpush1.msra.mxu0 %v873
    %906 = vmatprep.subr.mxu0 0.0
    %907 = vmatpush1.msra.mxu0 %v874
    %908 = vmatprep.subr.mxu0 0.0
    %909 = vmatpush1.msra.mxu0 %v875
    %910 = vmatprep.subr.mxu0 0.0
    %911 = vmatpush1.msra.mxu0 %v876
    %912 = vmatprep.subr.mxu0 0.0
    %913 = vmatpush1.msra.mxu0 %v877
    %914 = vmatprep.subr.mxu0 0.0
    %915 = vmatpush1.msra.mxu0 %v878
    %916 = vmatprep.subr.mxu0 0.0
    %917 = vmatpush1.msra.mxu0 %v879
    %918 = vmatprep.subr.mxu0 0.0
    %919 = vmatpush1.msra.mxu0 %v880
    %920 = vmatprep.subr.mxu0 0.0
    %921 = vmatpush1.msra.mxu0 0.0
    %922 = vmatprep.subr.mxu0 0.0
    %923 = vmatpush1.msra.mxu0 0.0
    %924 = vmatprep.subr.mxu0 0.0
    %925 = vmatpush1.msra.mxu0 0.0
    %926 = vmatprep.subr.mxu0 0.0
    %927 = vmatpush1.msra.mxu0 0.0
    %928 = vmatprep.subr.mxu0 0.0
    %929 = vmatpush1.msra.mxu0 0.0
    %930 = vmatprep.subr.mxu0 0.0
    %931 = vmatpush1.msra.mxu0 0.0
    %932 = vmatprep.subr.mxu0 0.0
    %933 = vmatpush1.msra.mxu0 0.0
    %934 = vmatprep.subr.mxu0 0.0
    %935 = vmatpush1.msra.mxu0 0.0
    %936 = vmatprep.subr.mxu0 0.0
    %937 = vmatpush1.msra.mxu0 0.0
    %938 = vmatprep.subr.mxu0 0.0
    %939 = vmatpush1.msra.mxu0 0.0
    %940 = vmatprep.subr.mxu0 0.0
    %941 = vmatpush1.msra.mxu0 0.0
    %942 = vmatprep.subr.mxu0 0.0
    %943 = vmatpush1.msra.mxu0 0.0
    %944 = vmatprep.subr.mxu0 0.0
    %945 = vmatpush1.msra.mxu0 0.0
    %946 = vmatprep.subr.mxu0 0.0
    %947 = vmatpush1.msra.mxu0 0.0
    %948 = vmatprep.subr.mxu0 0.0
    %949 = vmatpush1.msra.mxu0 0.0
    %950 = vmatprep.subr.mxu0 0.0
    %951 = vmatpush1.msra.mxu0 0.0
    %952 = vmatprep.mubr.f32.mxu0 0.0
    %953 = vmatmul.mubr.f32.gmra.mrb[0].mxu0 %v860
    %v954 = vpop.f32.mrb[0].mxu0
    %v955 = vadd.f32 %v886, %v954
    %v956 = vpop.f32.mrb[0].mxu0
    %957 = vdwg.mxu0
    %958 = vst [vmem:[#allocation14] sm:$0xff] %v955
    // Predicated region
    $region62: #{tpu_custom_call.1} parent=1 // pred_check
      _
    $region63: #{tpu_custom_call.1} parent=1 // pred_check_branch
      %960 = sbr.rel (0) target = $region65
    $region64: #{tpu_custom_call.1} parent=1 // pred_region
      %s962 = ssub.s32 128, 128
      %963 = vsyncadd [#allocation5], %s962
      %s965 = sshll.u32 [#allocation14], 4
      %s966 = int_to_ptr.vmem [resolvable:$true] %s965
      %968 = dma.vmem_to_hbm [thread:$0]  %s966, 128, %s9, [#allocation5]
    $region65: #{tpu_custom_call.1} parent=1 // pred_fallthru
      _
    // Predicated region
    $region66: #{tpu_custom_call.1} parent=1 // pred_check
      _
    $region67: #{tpu_custom_call.1} parent=1 // pred_check_branch
      %970 = sbr.rel (0) target = $region69
    $region68: #{tpu_custom_call.1} parent=1 // pred_region
      %s972 = ssub.s32 256, 256
      %973 = vsyncadd [#allocation16], %s972
      %s974 = sshll.u32 [#allocation15], 4
      %s975 = int_to_ptr.vmem [resolvable:$true] %s974
      %980 = dma.vmem_to_hbm [thread:$0]  %s975, 256, %s10, [#allocation16], 128, 128, 8
    $region69: #{tpu_custom_call.1} parent=1 // pred_fallthru
      _
    // Predicated region
    $region70: #{tpu_custom_call.1} parent=1 // pred_check
      _
    $region71: #{tpu_custom_call.1} parent=1 // pred_check_branch
      %982 = sbr.rel (0) target = $region73
    $region72: #{tpu_custom_call.1} parent=1 // pred_region
      %s984 = ssub.s32 256, 256
      %985 = vsyncadd [#allocation16], %s984
      %s986 = sshll.u32 [#allocation17], 4
      %s987 = int_to_ptr.vmem [resolvable:$true] %s986
      %992 = dma.vmem_to_hbm [thread:$0]  %s987, 256, %s11, [#allocation16], 128, 128, 8
    $region73: #{tpu_custom_call.1} parent=1 // pred_fallthru
      _
    // Predicated region
    $region74: #{tpu_custom_call.1} parent=1 // pred_check
      _
    $region75: #{tpu_custom_call.1} parent=1 // pred_check_branch
      %994 = sbr.rel (0) target = $region77
    $region76: #{tpu_custom_call.1} parent=1 // pred_region
      %995 = dma.done [#allocation5], 128
    $region77: #{tpu_custom_call.1} parent=1 // pred_fallthru
      _
    // Predicated region
    $region78: #{tpu_custom_call.1} parent=1 // pred_check
      _
    $region79: #{tpu_custom_call.1} parent=1 // pred_check_branch
      %997 = sbr.rel (0) target = $region81
    $region80: #{tpu_custom_call.1} parent=1 // pred_region
      %998 = dma.done [#allocation16], 256
    $region81: #{tpu_custom_call.1} parent=1 // pred_fallthru
      _
    // Predicated region
    $region82: #{tpu_custom_call.1} parent=1 // pred_check
      _
    $region83: #{tpu_custom_call.1} parent=1 // pred_check_branch
      %1000 = sbr.rel (0) target = $region85
    $region84: #{tpu_custom_call.1} parent=1 // pred_region
      %1001 = dma.done [#allocation16], 256
    $region85: #{tpu_custom_call.1} parent=1 // pred_fallthru
      _
    %1002 = vsyncpa [#allocation4], 1
    %1003 = vsyncpa [#allocation7], 1
    %1004 = vsyncpa [#allocation10], 1
    %1005 = vsyncpa [#allocation13], 1
    %1006 = vsyncpa [#allocation5], 1
    %1007 = vsyncpa [#allocation16], 1

</llo_original>
